<compile_context>
chip_gen: v7x
topology: tpu7x:2x2x1
jax: 0.10.0
libtpu: 0.0.40
codegen_flags: <defaults>
</compile_context>

<pallas_src>
import functools

import jax
import jax.numpy as jnp
from jax.experimental import pallas as pl
from jax.experimental.pallas import tpu as pltpu


# --------------------------------- helpers ----------------------------------
def _round_up(x, m):
    return ((x + m - 1) // m) * m


def _vmem_budget_bytes():
    """~80% of physical per-core VMEM (generation-aware; 128 MiB fallback)."""
    cap = None
    try:
        cap = getattr(pltpu.get_tpu_info(), "vmem_capacity_bytes", None)
    except Exception:
        cap = None
    if not cap:
        cap = 128 << 20
    return int(cap * 0.8)


# --------------------------------- kernels ----------------------------------
def _ffm_resident_kernel(xsp_ref, xcp_ref, wsp_ref, wcp_ref, bias_ref,
                         w1_ref, w2_ref, out_ref, psum_ref):
    # xsp_ref: (1, Csp, TILE), xcp_ref: (1, Ccp, TILE)   bf16/f32 input tiles
    # wsp_ref: (Cout, Csp), wcp_ref: (Cout, Ccp)         BN scale pre-folded
    # bias_ref: (Cout, 2)  [:,0]=BN bias, [:,1]=pool correction for padded cols
    # w1_ref: (Cmid, Cout) (1/HW folded), w2_ref: (Cout, Cmid)
    # out_ref: (1, Cout, HWpad)  resident in VMEM across the spatial axis
    # psum_ref: (Cout, 1)        f32 scratch: per-batch spatial sum of feat
    t = pl.program_id(1)
    n_tiles = pl.num_programs(1)
    tile = xsp_ref.shape[2]

    @pl.when(t == 0)
    def _():
        psum_ref[...] = jnp.zeros_like(psum_ref)

    # 1x1 conv as two lane-dense MXU matmuls, f32 accumulation.
    # TODO(synk): on v6e/v7x with Cin >= 256, concat the two tiles on sublanes
    # and run one K=Cin matmul to fill the 256-wide MXU (v5e keeps the split).
    y = jnp.dot(wsp_ref[...], xsp_ref[0], preferred_element_type=jnp.float32)
    y = y + jnp.dot(wcp_ref[...], xcp_ref[0], preferred_element_type=jnp.float32)
    feat = jnp.maximum(y + bias_ref[:, 0:1], 0.0)                 # (Cout, TILE) f32

    start = pl.multiple_of(t * tile, tile)
    out_ref[0, :, pl.ds(start, tile)] = feat.astype(out_ref.dtype)
    psum_ref[...] += jnp.sum(feat, axis=1, keepdims=True)

    @pl.when(t == n_tiles - 1)
    def _():
        # 1/HW is folded into w1; remove the padded-column relu(bias) term.
        pooled = psum_ref[...] - bias_ref[:, 1:2]
        h = jnp.maximum(
            jnp.dot(w1_ref[...], pooled, preferred_element_type=jnp.float32), 0.0)
        a1 = jax.nn.sigmoid(
            jnp.dot(w2_ref[...], h, preferred_element_type=jnp.float32)) + 1.0
        # feat*atten + feat == feat*(atten+1); rescale the resident block in
        # lane-dense chunks so f32 temporaries stay bounded by (Cout, TILE).
        n_chunks = out_ref.shape[2] // tile

        @pl.loop(0, n_chunks)
        def _(i):
            s = pl.multiple_of(i * tile, tile)
            blk = out_ref[0, :, pl.ds(s, tile)].astype(jnp.float32)
            out_ref[0, :, pl.ds(s, tile)] = (blk * a1).astype(out_ref.dtype)


def _ffm_stream_kernel(xsp_ref, xcp_ref, wsp_ref, wcp_ref, bias_ref,
                       w1_ref, w2_ref, feat_ref, atten_ref, psum_ref):
    # Streaming fallback pass 1: feat tiles -> HBM, (atten+1) -> tiny output.
    t = pl.program_id(1)
    n_tiles = pl.num_programs(1)

    @pl.when(t == 0)
    def _():
        psum_ref[...] = jnp.zeros_like(psum_ref)

    y = jnp.dot(wsp_ref[...], xsp_ref[0], preferred_element_type=jnp.float32)
    y = y + jnp.dot(wcp_ref[...], xcp_ref[0], preferred_element_type=jnp.float32)
    feat = jnp.maximum(y + bias_ref[:, 0:1], 0.0)
    feat_ref[0] = feat.astype(feat_ref.dtype)
    psum_ref[...] += jnp.sum(feat, axis=1, keepdims=True)

    @pl.when(t == n_tiles - 1)
    def _():
        pooled = psum_ref[...] - bias_ref[:, 1:2]
        h = jnp.maximum(
            jnp.dot(w1_ref[...], pooled, preferred_element_type=jnp.float32), 0.0)
        atten_ref[0] = jax.nn.sigmoid(
            jnp.dot(w2_ref[...], h, preferred_element_type=jnp.float32)) + 1.0


def _ffm_rescale_kernel(feat_ref, atten_ref, out_ref):
    # Streaming fallback pass 2: out = feat * (atten + 1).
    out_ref[0] = (feat_ref[0].astype(jnp.float32) * atten_ref[0]).astype(out_ref.dtype)


# --------------------------------- wrapper -----------------------------------
def feature_fusion_module(fsp, fcp, params, *, out_dtype=jnp.bfloat16,
                          io_dtype=jnp.bfloat16, force_streaming=None):
    """fsp, fcp: NCHW.  Returns NCHW `out_dtype`.

    HBM I/O defaults to bf16 (the op is bandwidth-bound; math stays f32
    in-kernel).  Pass io_dtype=out_dtype=float32 for bit-accurate checks.
    """
    N, c_sp, H, W = fsp.shape
    N2, c_cp, H2, W2 = fcp.shape
    assert N == N2 and (H, W) == (H2, W2)
    HW = H * W

    w_sp = params["w_sp"]            # (Cout, Csp)
    w_cp = params["w_cp"]            # (Cout, Ccp)
    bn_scale = params["bn_scale"]    # (Cout, 1)
    bn_bias = params["bn_bias"]      # (Cout, 1)
    w1 = params["w1"]                # (Cout//4, Cout)
    w2 = params["w2"]                # (Cout, Cout//4)
    out_chan, c_mid = w2.shape
    c_in = c_sp + c_cp

    io_bytes = jnp.dtype(io_dtype).itemsize
    out_bytes = jnp.dtype(out_dtype).itemsize

    budget = _vmem_budget_bytes()
    max_tile = 8192 if budget >= (80 << 20) else 4096   # bigger tiles on 128 MiB parts

    # Lane-dense spatial axis: pad HW to a multiple of the tile (tile % 128 == 0).
    tile = min(max_tile, _round_up(HW, 128))
    hw_pad = _round_up(HW, tile)
    n_tiles = hw_pad // tile
    n_pad = hw_pad - HW

    # Setup-time folds (free): BN scale into the conv weights, 1/HW into w1,
    # padded-column pooling correction packed with the bias into one (Cout, 2).
    scale32 = bn_scale.astype(jnp.float32)
    bias32 = bn_bias.astype(jnp.float32)
    w_sp_f = (w_sp.astype(jnp.float32) * scale32).astype(io_dtype)
    w_cp_f = (w_cp.astype(jnp.float32) * scale32).astype(io_dtype)
    bias_corr = jnp.concatenate(
        [bias32, float(n_pad) * jnp.maximum(bias32, 0.0)], axis=1)        # (Cout, 2)
    w1_f = w1.astype(jnp.float32) * (1.0 / HW)
    w2_f = w2.astype(jnp.float32)

    # NCHW -> (N, C, HWpad): cast + pad + reshape fuse into one pass over x.
    def _prep(x, c):
        x = x.reshape(N, c, HW).astype(io_dtype)
        if n_pad:
            x = jnp.pad(x, ((0, 0), (0, 0), (0, n_pad)))
        return x
    x_sp = _prep(fsp, c_sp)
    x_cp = _prep(fcp, c_cp)

    x_specs = [
        pl.BlockSpec((1, c_sp, tile), lambda n, t: (n, 0, t)),
        pl.BlockSpec((1, c_cp, tile), lambda n, t: (n, 0, t)),
        # TODO(synk): pipeline_mode=pl.Buffered(3) on these two on v7x to hide
        # DMA turnaround at 3.2 TB/s; sized against the VMEM budget.
    ]
    weight_specs = [
        pl.BlockSpec((out_chan, c_sp), lambda n, t: (0, 0)),
        pl.BlockSpec((out_chan, c_cp), lambda n, t: (0, 0)),
        pl.BlockSpec((out_chan, 2), lambda n, t: (0, 0)),
        pl.BlockSpec((c_mid, out_chan), lambda n, t: (0, 0)),
        pl.BlockSpec((out_chan, c_mid), lambda n, t: (0, 0)),
    ]
    weight_args = (w_sp_f, w_cp_f, bias_corr, w1_f, w2_f)

    # VMEM bookkeeping: double buffers + f32 elementwise temporaries included.
    weights_bytes = 2 * (out_chan * c_in * io_bytes
                         + (2 * c_mid * out_chan + 2 * out_chan) * 4)
    in_bytes = 2 * c_in * tile * io_bytes            # both inputs, 2 buffers each
    temp_bytes = 4 * out_chan * tile * 4             # y / feat / rescale f32 temps
    psum_bytes = out_chan * 128 * 4
    resident_bytes = 2 * out_chan * hw_pad * out_bytes
    est_resident = resident_bytes + in_bytes + weights_bytes + temp_bytes + psum_bytes

    streaming = force_streaming
    if streaming is None:
        # Resident single pass only if the per-batch (Cout, HWpad) block fits
        # the generation-aware budget; otherwise stream (hits first on v7x).
        streaming = est_resident > budget

    def _vmem_limit(est):
        return int(min(budget, max(int(est * 1.25) + (2 << 20), 32 << 20)))

    if not streaming:
        out = pl.pallas_call(
            _ffm_resident_kernel,
            out_shape=jax.ShapeDtypeStruct((N, out_chan, hw_pad), out_dtype),
            grid_spec=pltpu.PrefetchScalarGridSpec(
                num_scalar_prefetch=0,
                grid=(N, n_tiles),                     # batch parallel, spatial inner
                in_specs=x_specs + weight_specs,
                out_specs=pl.BlockSpec((1, out_chan, hw_pad), lambda n, t: (n, 0, 0)),
                scratch_shapes=[pltpu.VMEM((out_chan, 1), jnp.float32)],
            ),
            compiler_params=pltpu.CompilerParams(
                dimension_semantics=("parallel", "arbitrary"),
                vmem_limit_bytes=_vmem_limit(est_resident)),
        )(x_sp, x_cp, *weight_args)
    else:
        est_stream = (2 * out_chan * tile * out_bytes + in_bytes + weights_bytes
                      + temp_bytes + psum_bytes)
        feat, atten = pl.pallas_call(
            _ffm_stream_kernel,
            out_shape=(jax.ShapeDtypeStruct((N, out_chan, hw_pad), out_dtype),
                       jax.ShapeDtypeStruct((N, out_chan, 1), jnp.float32)),
            grid_spec=pltpu.PrefetchScalarGridSpec(
                num_scalar_prefetch=0,
                grid=(N, n_tiles),
                in_specs=x_specs + weight_specs,
                out_specs=(
                    pl.BlockSpec((1, out_chan, tile), lambda n, t: (n, 0, t)),
                    pl.BlockSpec((1, out_chan, 1), lambda n, t: (n, 0, 0)),
                ),
                scratch_shapes=[pltpu.VMEM((out_chan, 1), jnp.float32)],
            ),
            compiler_params=pltpu.CompilerParams(
                dimension_semantics=("parallel", "arbitrary"),
                vmem_limit_bytes=_vmem_limit(est_stream)),
        )(x_sp, x_cp, *weight_args)

        # TODO(synk): input_output_aliases={0: 0} here would reuse the feat HBM
        # buffer for the output; kept unaliased for portability.
        est_rescale = (4 * out_chan * tile * (out_bytes + 4)) + 2 * out_chan * 4
        out = pl.pallas_call(
            _ffm_rescale_kernel,
            out_shape=jax.ShapeDtypeStruct((N, out_chan, hw_pad), out_dtype),
            grid_spec=pltpu.PrefetchScalarGridSpec(
                num_scalar_prefetch=0,
                grid=(N, n_tiles),
                in_specs=[
                    pl.BlockSpec((1, out_chan, tile), lambda n, t: (n, 0, t)),
                    pl.BlockSpec((1, out_chan, 1), lambda n, t: (n, 0, 0)),
                ],
                out_specs=pl.BlockSpec((1, out_chan, tile), lambda n, t: (n, 0, t)),
            ),
            compiler_params=pltpu.CompilerParams(
                dimension_semantics=("parallel", "parallel"),
                vmem_limit_bytes=_vmem_limit(est_rescale)),
        )(feat, atten)

    # TODO(synk): when N == 1 on v7x (2 TensorCores), also split the spatial
    # axis across cores; batch-only parallelism leaves one core idle.
    if n_pad:
        out = out[:, :, :HW]
    return out.reshape(N, out_chan, H, W)


# ----------------------------- parameter setup --------------------------------
def make_params(key, c_sp, c_cp, out_chan):
    in_chan = c_sp + c_cp
    c_mid = out_chan // 4
    ks = jax.random.split(key, 6)
    eps = 1e-5
    w_cb = jax.random.normal(ks[0], (out_chan, in_chan), jnp.float32) * 0.1
    w1 = jax.random.normal(ks[1], (c_mid, out_chan), jnp.float32) * 0.1
    w2 = jax.random.normal(ks[2], (out_chan, c_mid), jnp.float32) * 0.1
    gamma = 1.0 + 0.05 * jax.random.normal(ks[3], (out_chan,), jnp.float32)
    beta = 0.05 * jax.random.normal(ks[4], (out_chan,), jnp.float32)
    running_mean = 0.05 * jax.random.normal(ks[5], (out_chan,), jnp.float32)
    running_var = jnp.ones((out_chan,), jnp.float32)
    scale = gamma / jnp.sqrt(running_var + eps)
    bias = beta - running_mean * scale
    return {
        "w_sp": w_cb[:, :c_sp],
        "w_cp": w_cb[:, c_sp:],
        "bn_scale": scale.reshape(out_chan, 1),
        "bn_bias": bias.reshape(out_chan, 1),
        "w1": w1,
        "w2": w2,
    }


def reference_jax(fsp, fcp, params):
    fcat = jnp.concatenate([fsp, fcp], axis=1)                       # (N, Cin, H, W)
    w = jnp.concatenate([params["w_sp"], params["w_cp"]], axis=1)    # (Cout, Cin)
    y = jnp.einsum("oc,nchw->nohw", w, fcat)
    scale = params["bn_scale"][:, 0][None, :, None, None]
    bias = params["bn_bias"][:, 0][None, :, None, None]
    feat = jnp.maximum(y * scale + bias, 0.0)
    pooled = feat.mean(axis=(2, 3))                                  # (N, Cout)
    h = jnp.maximum(pooled @ params["w1"].T, 0.0)
    atten = jax.nn.sigmoid(h @ params["w2"].T)                       # (N, Cout)
    return feat * atten[:, :, None, None] + feat


if __name__ == "__main__":
    key = jax.random.PRNGKey(0)
    k_fsp, k_fcp, k_par = jax.random.split(key, 3)

    N, H, W = 2, 16, 16
    c_sp, c_cp = 8, 8              # in_chan = 16
    out_chan = 32                  # out_chan // 4 = 8

    fsp = jax.random.normal(k_fsp, (N, c_sp, H, W), jnp.float32)
    fcp = jax.random.normal(k_fcp, (N, c_cp, H, W), jnp.float32)
    params = make_params(k_par, c_sp, c_cp, out_chan)
    ref = reference_jax(fsp, fcp, params)

    # 1) f32 I/O, resident single-pass: tight numerical check of the math path.
    out32 = jax.block_until_ready(feature_fusion_module(
        fsp, fcp, params, out_dtype=jnp.float32, io_dtype=jnp.float32))
    assert out32.shape == (N, out_chan, H, W), out32.shape
    assert jnp.allclose(out32, ref, rtol=1e-4, atol=1e-4), float(
        jnp.max(jnp.abs(out32 - ref)))

    # 2) default bf16 HBM I/O (bandwidth-optimized): loose tolerance.
    outbf = jax.block_until_ready(feature_fusion_module(fsp, fcp, params))
    assert outbf.dtype == jnp.bfloat16
    assert jnp.allclose(outbf.astype(jnp.float32), ref, rtol=3e-2, atol=3e-2), float(
        jnp.max(jnp.abs(outbf.astype(jnp.float32) - ref)))

    # 3) forced streaming (two-pass) fallback, f32: tight check.
    outst = jax.block_until_ready(feature_fusion_module(
        fsp, fcp, params, out_dtype=jnp.float32, io_dtype=jnp.float32,
        force_streaming=True))
    assert jnp.allclose(outst, ref, rtol=1e-4, atol=1e-4), float(
        jnp.max(jnp.abs(outst - ref)))

    # 4) non-multiple-of-128 spatial size: exercises lane padding + pool fix.
    Hs, Ws = 10, 10
    fsp2 = jax.random.normal(k_fsp, (N, c_sp, Hs, Ws), jnp.float32)
    fcp2 = jax.random.normal(k_fcp, (N, c_cp, Hs, Ws), jnp.float32)
    ref2 = reference_jax(fsp2, fcp2, params)
    out2 = jax.block_until_ready(feature_fusion_module(
        fsp2, fcp2, params, out_dtype=jnp.float32, io_dtype=jnp.float32))
    assert out2.shape == (N, out_chan, Hs, Ws), out2.shape
    assert jnp.allclose(out2, ref2, rtol=1e-4, atol=1e-4), float(
        jnp.max(jnp.abs(out2 - ref2)))

    print("KERNEL_OK")
</pallas_src>

<mosaic_0001>
module attributes {stable_mosaic.version = 11 : i64} {
  func.func @_ffm_resident_kernel(%arg0: i32, %arg1: i32, %arg2: memref<1x8x256xf32, #tpu.memory_space<vmem>>, %arg3: memref<1x8x256xf32, #tpu.memory_space<vmem>>, %arg4: memref<32x8xf32, #tpu.memory_space<vmem>>, %arg5: memref<32x8xf32, #tpu.memory_space<vmem>>, %arg6: memref<32x2xf32, #tpu.memory_space<vmem>>, %arg7: memref<8x32xf32, #tpu.memory_space<vmem>>, %arg8: memref<32x8xf32, #tpu.memory_space<vmem>>, %arg9: memref<1x32x256xf32, #tpu.memory_space<vmem>>, %arg10: memref<32x1xf32, #tpu.memory_space<vmem>>) attributes {dimension_semantics = [#tpu.dimension_semantics<parallel>, #tpu.dimension_semantics<arbitrary>], iteration_bounds = array<i64: 2, 1>, scalar_prefetch = 0 : i64, scratch_operands = 1 : i64, tpu.core_type = #tpu.core_type<tc>, window_params = [{transform_indices = @transform_0, window_bounds = array<i64: 1, 8, 256>}, {transform_indices = @transform_1, window_bounds = array<i64: 1, 8, 256>}, {pipeline_mode = #tpu.pipeline_mode<synchronous>, transform_indices = @transform_2, window_bounds = array<i64: 32, 8>}, {pipeline_mode = #tpu.pipeline_mode<synchronous>, transform_indices = @transform_3, window_bounds = array<i64: 32, 8>}, {pipeline_mode = #tpu.pipeline_mode<synchronous>, transform_indices = @transform_4, window_bounds = array<i64: 32, 2>}, {pipeline_mode = #tpu.pipeline_mode<synchronous>, transform_indices = @transform_5, window_bounds = array<i64: 8, 32>}, {pipeline_mode = #tpu.pipeline_mode<synchronous>, transform_indices = @transform_6, window_bounds = array<i64: 32, 8>}, {transform_indices = @transform_7, window_bounds = array<i64: 1, 32, 256>}]} {
    %c0_i32 = arith.constant 0 : i32
    %0 = arith.cmpi eq, %arg1, %c0_i32 : i32
    %1 = arith.extui %0 : i1 to i32
    %c0_i32_0 = arith.constant 0 : i32
    %2 = arith.cmpi ne, %1, %c0_i32_0 : i32
    scf.if %2 {
      %cst_23 = arith.constant 0.000000e+00 : f32
      %31 = vector.broadcast %cst_23 : f32 to vector<32x1xf32>
      %c0_24 = arith.constant 0 : index
      %c0_25 = arith.constant 0 : index
      %32 = vector.load %arg10[%c0_24, %c0_25] : memref<32x1xf32, #tpu.memory_space<vmem>>, vector<32x1xf32>
      tpu.vector_store %arg10[%c0_24, %c0_25], %31 {strides = array<i32>} : memref<32x1xf32, #tpu.memory_space<vmem>>, vector<32x1xf32>,
    } else {
    }
    %c0 = arith.constant 0 : index
    %c0_1 = arith.constant 0 : index
    %3 = vector.load %arg4[%c0, %c0_1] : memref<32x8xf32, #tpu.memory_space<vmem>>, vector<32x8xf32>
    %c0_2 = arith.constant 0 : index
    %c0_3 = arith.constant 0 : index
    %c0_4 = arith.constant 0 : index
    %4 = vector.load %arg2[%c0_2, %c0_3, %c0_4] : memref<1x8x256xf32, #tpu.memory_space<vmem>>, vector<1x8x256xf32>
    %5 = vector.shape_cast %4 : vector<1x8x256xf32> to vector<8x256xf32>
    %cst = arith.constant dense<0.000000e+00> : vector<32x256xf32>
    %6 = tpu.matmul %3, %5, %cst {dimension_numbers = #tpu.dot_dimension_numbers<[1], [0], [0], [1], [0, 0, 1, 1], [], []>} : vector<32x8xf32>, vector<8x256xf32>, vector<32x256xf32> -> vector<32x256xf32>
    %c0_5 = arith.constant 0 : index
    %c0_6 = arith.constant 0 : index
    %7 = vector.load %arg5[%c0_5, %c0_6] : memref<32x8xf32, #tpu.memory_space<vmem>>, vector<32x8xf32>
    %c0_7 = arith.constant 0 : index
    %c0_8 = arith.constant 0 : index
    %c0_9 = arith.constant 0 : index
    %8 = vector.load %arg3[%c0_7, %c0_8, %c0_9] : memref<1x8x256xf32, #tpu.memory_space<vmem>>, vector<1x8x256xf32>
    %9 = vector.shape_cast %8 : vector<1x8x256xf32> to vector<8x256xf32>
    %cst_10 = arith.constant dense<0.000000e+00> : vector<32x256xf32>
    %10 = tpu.matmul %7, %9, %cst_10 {dimension_numbers = #tpu.dot_dimension_numbers<[1], [0], [0], [1], [0, 0, 1, 1], [], []>} : vector<32x8xf32>, vector<8x256xf32>, vector<32x256xf32> -> vector<32x256xf32>
    %11 = arith.addf %6, %10 : vector<32x256xf32>
    %c0_11 = arith.constant 0 : index
    %c0_12 = arith.constant 0 : index
    %12 = vector.load %arg6[%c0_11, %c0_12] : memref<32x2xf32, #tpu.memory_space<vmem>>, vector<32x1xf32>
    %13 = vector.broadcast %12 : vector<32x1xf32> to vector<32x256xf32>
    %14 = arith.addf %11, %13 : vector<32x256xf32>
    %cst_13 = arith.constant 0.000000e+00 : f32
    %15 = vector.broadcast %cst_13 : f32 to vector<32x256xf32>
    %16 = arith.maximumf %14, %15 : vector<32x256xf32>
    %c256_i32 = arith.constant 256 : i32
    %17 = arith.muli %arg1, %c256_i32 : i32
    %18 = tpu.assume_multiple %17, 256 : i32
    %c0_14 = arith.constant 0 : index
    %c0_15 = arith.constant 0 : index
    %19 = arith.index_cast %18 : i32 to index
    %20 = vector.load %arg9[%c0_14, %c0_15, %19] : memref<1x32x256xf32, #tpu.memory_space<vmem>>, vector<1x32x256xf32>
    %21 = vector.shape_cast %20 : vector<1x32x256xf32> to vector<32x256xf32>
    %22 = vector.shape_cast %16 : vector<32x256xf32> to vector<1x32x256xf32>
    tpu.vector_store %arg9[%c0_14, %c0_15, %19], %22 {strides = array<i32>} : memref<1x32x256xf32, #tpu.memory_space<vmem>>, vector<1x32x256xf32>,
    %c0_16 = arith.constant 0 : index
    %c0_17 = arith.constant 0 : index
    %23 = vector.load %arg10[%c0_16, %c0_17] : memref<32x1xf32, #tpu.memory_space<vmem>>, vector<32x1xf32>
    %cst_18 = arith.constant dense<0.000000e+00> : vector<32xf32>
    %24 = vector.multi_reduction <add>, %16, %cst_18 [1] : vector<32x256xf32> to vector<32xf32>
    %25 = vector.shape_cast %24 : vector<32xf32> to vector<32x1xf32>
    %26 = arith.addf %23, %25 : vector<32x1xf32>
    %c0_19 = arith.constant 0 : index
    %c0_20 = arith.constant 0 : index
    %27 = vector.load %arg10[%c0_19, %c0_20] : memref<32x1xf32, #tpu.memory_space<vmem>>, vector<32x1xf32>
    tpu.vector_store %arg10[%c0_19, %c0_20], %26 {strides = array<i32>} : memref<32x1xf32, #tpu.memory_space<vmem>>, vector<32x1xf32>,
    %c0_i32_21 = arith.constant 0 : i32
    %28 = arith.cmpi eq, %arg1, %c0_i32_21 : i32
    %29 = arith.extui %28 : i1 to i32
    %c0_i32_22 = arith.constant 0 : i32
    %30 = arith.cmpi ne, %29, %c0_i32_22 : i32
    scf.if %30 {
      %c0_23 = arith.constant 0 : index
      %c0_24 = arith.constant 0 : index
      %31 = vector.load %arg10[%c0_23, %c0_24] : memref<32x1xf32, #tpu.memory_space<vmem>>, vector<32x1xf32>
      %c0_25 = arith.constant 0 : index
      %c1 = arith.constant 1 : index
      %32 = vector.load %arg6[%c0_25, %c1] : memref<32x2xf32, #tpu.memory_space<vmem>>, vector<32x1xf32>
      %33 = arith.subf %31, %32 : vector<32x1xf32>
      %c0_26 = arith.constant 0 : index
      %c0_27 = arith.constant 0 : index
      %34 = vector.load %arg7[%c0_26, %c0_27] : memref<8x32xf32, #tpu.memory_space<vmem>>, vector<8x32xf32>
      %cst_28 = arith.constant dense<0.000000e+00> : vector<8x1xf32>
      %35 = tpu.matmul %34, %33, %cst_28 {dimension_numbers = #tpu.dot_dimension_numbers<[1], [0], [0], [1], [0, 0, 1, 1], [], []>} : vector<8x32xf32>, vector<32x1xf32>, vector<8x1xf32> -> vector<8x1xf32>
      %cst_29 = arith.constant 0.000000e+00 : f32
      %36 = vector.broadcast %cst_29 : f32 to vector<8x1xf32>
      %37 = arith.maximumf %35, %36 : vector<8x1xf32>
      %c0_30 = arith.constant 0 : index
      %c0_31 = arith.constant 0 : index
      %38 = vector.load %arg8[%c0_30, %c0_31] : memref<32x8xf32, #tpu.memory_space<vmem>>, vector<32x8xf32>
      %cst_32 = arith.constant dense<0.000000e+00> : vector<32x1xf32>
      %39 = tpu.matmul %38, %37, %cst_32 {dimension_numbers = #tpu.dot_dimension_numbers<[1], [0], [0], [1], [0, 0, 1, 1], [], []>} : vector<32x8xf32>, vector<8x1xf32>, vector<32x1xf32> -> vector<32x1xf32>
      %40 = arith.negf %39 : vector<32x1xf32>
      %41 = math.exp %40 : vector<32x1xf32>
      %cst_33 = arith.constant 1.000000e+00 : f32
      %42 = vector.broadcast %cst_33 : f32 to vector<32x1xf32>
      %43 = arith.addf %42, %41 : vector<32x1xf32>
      %44 = arith.divf %42, %43 : vector<32x1xf32>
      %cst_34 = arith.constant 1.000000e+00 : f32
      %45 = vector.broadcast %cst_34 : f32 to vector<32x1xf32>
      %46 = arith.addf %44, %45 : vector<32x1xf32>
      %c0_i32_35 = arith.constant 0 : i32
      %c1_i32 = arith.constant 1 : i32
      %47 = arith.muli %c0_i32_35, %c1_i32 : i32
      %c0_i32_36 = arith.constant 0 : i32
      %48 = arith.addi %c0_i32_36, %47 : i32
      %c256_i32_37 = arith.constant 256 : i32
      %49 = arith.muli %48, %c256_i32_37 : i32
      %50 = tpu.assume_multiple %49, 256 : i32
      %c0_38 = arith.constant 0 : index
      %c0_39 = arith.constant 0 : index
      %51 = arith.index_cast %50 : i32 to index
      %52 = vector.load %arg9[%c0_38, %c0_39, %51] : memref<1x32x256xf32, #tpu.memory_space<vmem>>, vector<1x32x256xf32>
      %53 = vector.shape_cast %52 : vector<1x32x256xf32> to vector<32x256xf32>
      %54 = vector.broadcast %46 : vector<32x1xf32> to vector<32x256xf32>
      %55 = arith.mulf %53, %54 : vector<32x256xf32>
      %c0_40 = arith.constant 0 : index
      %c0_41 = arith.constant 0 : index
      %56 = arith.index_cast %50 : i32 to index
      %57 = vector.load %arg9[%c0_40, %c0_41, %56] : memref<1x32x256xf32, #tpu.memory_space<vmem>>, vector<1x32x256xf32>
      %58 = vector.shape_cast %57 : vector<1x32x256xf32> to vector<32x256xf32>
      %59 = vector.shape_cast %55 : vector<32x256xf32> to vector<1x32x256xf32>
      tpu.vector_store %arg9[%c0_40, %c0_41, %56], %59 {strides = array<i32>} : memref<1x32x256xf32, #tpu.memory_space<vmem>>, vector<1x32x256xf32>,
      %c1_i32_42 = arith.constant 1 : i32
    } else {
    }
    return
  }
  func.func @transform_0(%arg0: i32, %arg1: i32) -> (i32, i32, i32) {
    %c0_i32 = arith.constant 0 : i32
    %c0_i32_0 = arith.constant 0 : i32
    return %arg0, %c0_i32, %arg1 : i32, i32, i32
  }
  func.func @transform_1(%arg0: i32, %arg1: i32) -> (i32, i32, i32) {
    %c0_i32 = arith.constant 0 : i32
    %c0_i32_0 = arith.constant 0 : i32
    return %arg0, %c0_i32, %arg1 : i32, i32, i32
  }
  func.func @transform_2(%arg0: i32, %arg1: i32) -> (i32, i32) {
    %c0_i32 = arith.constant 0 : i32
    %c0_i32_0 = arith.constant 0 : i32
    %c0_i32_1 = arith.constant 0 : i32
    return %c0_i32, %c0_i32_0 : i32, i32
  }
  func.func @transform_3(%arg0: i32, %arg1: i32) -> (i32, i32) {
    %c0_i32 = arith.constant 0 : i32
    %c0_i32_0 = arith.constant 0 : i32
    %c0_i32_1 = arith.constant 0 : i32
    return %c0_i32, %c0_i32_0 : i32, i32
  }
  func.func @transform_4(%arg0: i32, %arg1: i32) -> (i32, i32) {
    %c0_i32 = arith.constant 0 : i32
    %c0_i32_0 = arith.constant 0 : i32
    %c0_i32_1 = arith.constant 0 : i32
    return %c0_i32, %c0_i32_0 : i32, i32
  }
  func.func @transform_5(%arg0: i32, %arg1: i32) -> (i32, i32) {
    %c0_i32 = arith.constant 0 : i32
    %c0_i32_0 = arith.constant 0 : i32
    %c0_i32_1 = arith.constant 0 : i32
    return %c0_i32, %c0_i32_0 : i32, i32
  }
  func.func @transform_6(%arg0: i32, %arg1: i32) -> (i32, i32) {
    %c0_i32 = arith.constant 0 : i32
    %c0_i32_0 = arith.constant 0 : i32
    %c0_i32_1 = arith.constant 0 : i32
    return %c0_i32, %c0_i32_0 : i32, i32
  }
  func.func @transform_7(%arg0: i32, %arg1: i32) -> (i32, i32, i32) {
    %c0_i32 = arith.constant 0 : i32
    %c0_i32_0 = arith.constant 0 : i32
    %c0_i32_1 = arith.constant 0 : i32
    return %arg0, %c0_i32, %c0_i32_0 : i32, i32, i32
  }
}

</mosaic_0001>

<llo_original>
// kernel: tpu_custom_call.1
$region0: #{tpu_custom_call.1}
  #allocation0 [shape = 'u32[]', space=smem, size = 0x4, offset = 0x4, fixed_abs, tag = 'smem constant byte address 0x4 - core index']
  #allocation1 [shape = 'u32[144,128]{1,0:T(1,128)}', space=vmem, size = 0x12000, scoped, tag = 'internal scratch']
  #allocation2 [shape = 'f32[32,1]{1,0:T(8,128)}', space=vmem, size = 0x4000, scoped, tag = 'scratch operand']
  %s0 = inlined_call_operand.vmem [shape: f32[2,8,256], index: 0, kind: input, shape index: {}]
  %s1 = inlined_call_operand.vmem [shape: f32[2,8,256], index: 1, kind: input, shape index: {}]
  %s2 = inlined_call_operand.vmem [shape: f32[32,8], index: 2, kind: input, shape index: {}]
  %s3 = inlined_call_operand.vmem [shape: f32[32,8], index: 3, kind: input, shape index: {}]
  %s4 = inlined_call_operand.vmem [shape: f32[32,2], index: 4, kind: input, shape index: {}]
  %s5 = inlined_call_operand.vmem [shape: f32[8,32], index: 5, kind: input, shape index: {}]
  %s6 = inlined_call_operand.vmem [shape: f32[32,8], index: 6, kind: input, shape index: {}]
  %s7 = inlined_call_operand.hbm [shape: f32[2,32,256], index: 7, kind: output, shape index: {}]
  %s8 = sld [smem:[#allocation0]]
  $region69: #{tpu_custom_call.1} parent=0
    _
  %s10 = ssub.s32 1, %s8
  %s11 = scalar_select 0, %s10, %s8
  $region1: #{tpu_custom_call.1} parent=0
    #allocation3 [shape = 'u8[65536]{0}', space=vmem, size = 0x10000, scoped, tag = 'output window, operand 0']
    #allocation4 [shape = 's32[2]{0}', space=sflag, size = 0x8, scoped, tag = 'scoped memory for tpu_custom_call.1']
    %12 = vsyncpa [#allocation4], 0
    %s13 = scalar_lea.sflag [#allocation4], 1
    %14 = vsyncpa %s13, 0
    loop: start=0, step=1, limit=4
    $region2: #{tpu_custom_call.1} parent=1 // loop_pre_header
      _
    $region3: #{tpu_custom_call.1} parent=1 // loop_header
      %s16 = sphi 0, %s20
      %p17 = scmp.ge.s32.totalorder %s16, 4
      %s23 = sphi 0, %s35
      %s24 = sphi 0, %s31
      %s25 = sphi 0, %s23
      %s26 = sphi 0, %s24
      %s27 = sphi 0, %s25
      %s28 = sphi 0, %s26
      %s40 = sphi 0, %s42
      %s43 = sphi 0, %s40
      %s44 = sphi 0, %s43
      %s60 = sphi 0, %s44
      %s68 = sphi 0, %s70
      %s71 = sphi 0, %s68
      %s72 = sphi 0, %s71
      %s88 = sphi 0, %s72
      %s92 = sphi 0, %s92
      %s94 = sphi 0, %s92
      %s95 = sphi 0, %s94
      %s109 = sphi 0, %s95
      %s113 = sphi 0, %s113
      %s115 = sphi 0, %s113
      %s116 = sphi 0, %s115
      %s130 = sphi 0, %s116
      %s134 = sphi 0, %s134
      %s136 = sphi 0, %s134
      %s137 = sphi 0, %s136
      %s151 = sphi 0, %s137
      %s155 = sphi 0, %s155
      %s157 = sphi 0, %s155
      %s158 = sphi 0, %s157
      %s172 = sphi 0, %s158
      %s176 = sphi 0, %s176
      %s178 = sphi 0, %s176
      %s179 = sphi 0, %s178
      %s193 = sphi 0, %s179
      %s199 = sphi 0, %s201
      %s202 = sphi 0, %s199
      %s203 = sphi 0, %s202
      %s219 = sphi 0, %s203
    $region4: #{tpu_custom_call.1} parent=1 // loop_header_branch
      %19 = sbr.rel (%p17) target = $region8
    $region5: #{tpu_custom_call.1} parent=1 // loop_body
      %s21 = ssub.s32 %s16, 1
      %s22 = ssub.s32 %s16, 2
      %s29 = sadd.s32 1, %s24
      %p30 = scmp.ge.s32.totalorder %s29, 1
      %s31 = scalar_select %p30, 0, %s29
      %s32 = sadd.s32 1, %s23
      %s33 = scalar_select %p30, %s32, %s23
      %p34 = scmp.ge.s32.totalorder %s33, 2
      %s35 = scalar_select %p34, 0, %s33
      %s36 = ssub.s32 %s23, %s35
      %s37 = ssub.s32 %s24, %s31
      %s38 = sor.u32 %s36, %s37
      %p39 = scmp.eq.s32.totalorder %s38, 0
      %s41 = sadd.s32 %s40, 1
      %s42 = scalar_select %p39, %s40, %s41
      %p45 = pneg %p39
      %p46 = scmp.eq.s32.totalorder %s16, 1
      %p47 = por %p45, %p46
      %p48 = scmp.ne.s32.totalorder %s40, %s43
      %p49 = scmp.eq.s32.totalorder %s16, 0
      %p50 = por %p48, %p49
      %p51 = scmp.ne.s32.totalorder %s40, %s43
      %p52 = scmp.eq.s32.totalorder %s21, 1
      %p53 = por %p51, %p52
      %p54 = scmp.ne.s32.totalorder %s43, %s44
      %p55 = scmp.eq.s32.totalorder %s21, 0
      %p56 = por %p54, %p55
      %p57 = scmp.ne.s32.totalorder %s43, %s44
      %p58 = scmp.eq.s32.totalorder %s22, 1
      %p59 = por %p57, %p58
      %p61 = scmp.ne.s32.totalorder %s44, %s60
      %p62 = scmp.eq.s32.totalorder %s22, 0
      %p63 = por %p61, %p62
      %s64 = ssub.s32 %s23, %s35
      %s65 = ssub.s32 %s24, %s31
      %s66 = sor.u32 %s64, %s65
      %p67 = scmp.eq.s32.totalorder %s66, 0
      %s69 = sadd.s32 %s68, 1
      %s70 = scalar_select %p67, %s68, %s69
      %p73 = pneg %p67
      %p74 = scmp.eq.s32.totalorder %s16, 1
      %p75 = por %p73, %p74
      %p76 = scmp.ne.s32.totalorder %s68, %s71
      %p77 = scmp.eq.s32.totalorder %s16, 0
      %p78 = por %p76, %p77
      %p79 = scmp.ne.s32.totalorder %s68, %s71
      %p80 = scmp.eq.s32.totalorder %s21, 1
      %p81 = por %p79, %p80
      %p82 = scmp.ne.s32.totalorder %s71, %s72
      %p83 = scmp.eq.s32.totalorder %s21, 0
      %p84 = por %p82, %p83
      %p85 = scmp.ne.s32.totalorder %s71, %s72
      %p86 = scmp.eq.s32.totalorder %s22, 1
      %p87 = por %p85, %p86
      %p89 = scmp.ne.s32.totalorder %s72, %s88
      %p90 = scmp.eq.s32.totalorder %s22, 0
      %p91 = por %p89, %p90
      %s93 = sadd.s32 %s92, 1
      %p96 = scmp.eq.s32.totalorder %s16, 1
      %p97 = scmp.ne.s32.totalorder %s92, %s94
      %p98 = scmp.eq.s32.totalorder %s16, 0
      %p99 = por %p97, %p98
      %p100 = scmp.ne.s32.totalorder %s92, %s94
      %p101 = scmp.eq.s32.totalorder %s21, 1
      %p102 = por %p100, %p101
      %p103 = scmp.ne.s32.totalorder %s94, %s95
      %p104 = scmp.eq.s32.totalorder %s21, 0
      %p105 = por %p103, %p104
      %p106 = scmp.ne.s32.totalorder %s94, %s95
      %p107 = scmp.eq.s32.totalorder %s22, 1
      %p108 = por %p106, %p107
      %p110 = scmp.ne.s32.totalorder %s95, %s109
      %p111 = scmp.eq.s32.totalorder %s22, 0
      %p112 = por %p110, %p111
      %s114 = sadd.s32 %s113, 1
      %p117 = scmp.eq.s32.totalorder %s16, 1
      %p118 = scmp.ne.s32.totalorder %s113, %s115
      %p119 = scmp.eq.s32.totalorder %s16, 0
      %p120 = por %p118, %p119
      %p121 = scmp.ne.s32.totalorder %s113, %s115
      %p122 = scmp.eq.s32.totalorder %s21, 1
      %p123 = por %p121, %p122
      %p124 = scmp.ne.s32.totalorder %s115, %s116
      %p125 = scmp.eq.s32.totalorder %s21, 0
      %p126 = por %p124, %p125
      %p127 = scmp.ne.s32.totalorder %s115, %s116
      %p128 = scmp.eq.s32.totalorder %s22, 1
      %p129 = por %p127, %p128
      %p131 = scmp.ne.s32.totalorder %s116, %s130
      %p132 = scmp.eq.s32.totalorder %s22, 0
      %p133 = por %p131, %p132
      %s135 = sadd.s32 %s134, 1
      %p138 = scmp.eq.s32.totalorder %s16, 1
      %p139 = scmp.ne.s32.totalorder %s134, %s136
      %p140 = scmp.eq.s32.totalorder %s16, 0
      %p141 = por %p139, %p140
      %p142 = scmp.ne.s32.totalorder %s134, %s136
      %p143 = scmp.eq.s32.totalorder %s21, 1
      %p144 = por %p142, %p143
      %p145 = scmp.ne.s32.totalorder %s136, %s137
      %p146 = scmp.eq.s32.totalorder %s21, 0
      %p147 = por %p145, %p146
      %p148 = scmp.ne.s32.totalorder %s136, %s137
      %p149 = scmp.eq.s32.totalorder %s22, 1
      %p150 = por %p148, %p149
      %p152 = scmp.ne.s32.totalorder %s137, %s151
      %p153 = scmp.eq.s32.totalorder %s22, 0
      %p154 = por %p152, %p153
      %s156 = sadd.s32 %s155, 1
      %p159 = scmp.eq.s32.totalorder %s16, 1
      %p160 = scmp.ne.s32.totalorder %s155, %s157
      %p161 = scmp.eq.s32.totalorder %s16, 0
      %p162 = por %p160, %p161
      %p163 = scmp.ne.s32.totalorder %s155, %s157
      %p164 = scmp.eq.s32.totalorder %s21, 1
      %p165 = por %p163, %p164
      %p166 = scmp.ne.s32.totalorder %s157, %s158
      %p167 = scmp.eq.s32.totalorder %s21, 0
      %p168 = por %p166, %p167
      %p169 = scmp.ne.s32.totalorder %s157, %s158
      %p170 = scmp.eq.s32.totalorder %s22, 1
      %p171 = por %p169, %p170
      %p173 = scmp.ne.s32.totalorder %s158, %s172
      %p174 = scmp.eq.s32.totalorder %s22, 0
      %p175 = por %p173, %p174
      %s177 = sadd.s32 %s176, 1
      %p180 = scmp.eq.s32.totalorder %s16, 1
      %p181 = scmp.ne.s32.totalorder %s176, %s178
      %p182 = scmp.eq.s32.totalorder %s16, 0
      %p183 = por %p181, %p182
      %p184 = scmp.ne.s32.totalorder %s176, %s178
      %p185 = scmp.eq.s32.totalorder %s21, 1
      %p186 = por %p184, %p185
      %p187 = scmp.ne.s32.totalorder %s178, %s179
      %p188 = scmp.eq.s32.totalorder %s21, 0
      %p189 = por %p187, %p188
      %p190 = scmp.ne.s32.totalorder %s178, %s179
      %p191 = scmp.eq.s32.totalorder %s22, 1
      %p192 = por %p190, %p191
      %p194 = scmp.ne.s32.totalorder %s179, %s193
      %p195 = scmp.eq.s32.totalorder %s22, 0
      %p196 = por %p194, %p195
      %s197 = ssub.s32 %s23, %s35
      %p198 = scmp.eq.s32.totalorder %s197, 0
      %s200 = sadd.s32 %s199, 1
      %s201 = scalar_select %p198, %s199, %s200
      %p204 = pneg %p198
      %p205 = scmp.eq.s32.totalorder %s16, 1
      %p206 = por %p204, %p205
      %p207 = scmp.ne.s32.totalorder %s199, %s202
      %p208 = scmp.eq.s32.totalorder %s16, 0
      %p209 = por %p207, %p208
      %p210 = scmp.ne.s32.totalorder %s199, %s202
      %p211 = scmp.eq.s32.totalorder %s21, 1
      %p212 = por %p210, %p211
      %p213 = scmp.ne.s32.totalorder %s202, %s203
      %p214 = scmp.eq.s32.totalorder %s21, 0
      %p215 = por %p213, %p214
      %p216 = scmp.ne.s32.totalorder %s202, %s203
      %p217 = scmp.eq.s32.totalorder %s22, 1
      %p218 = por %p216, %p217
      %p220 = scmp.ne.s32.totalorder %s203, %s219
      %p221 = scmp.eq.s32.totalorder %s22, 0
      %p222 = por %p220, %p221
      %p223 = scmp.le.s32.totalorder 1, %s16
      %p224 = scmp.lt.s32.totalorder %s16, 3
      %p225 = pnand %p223, %p224
      %p226 = pneg %p225
      // Predicated region
      $region9: #{tpu_custom_call.1} parent=5 // pred_check
        _
      $region10: #{tpu_custom_call.1} parent=5 // pred_check_branch
        %228 = sbr.rel (%p225) target = $region12
      $region11: #{tpu_custom_call.1} parent=5 // pred_region
        %s229 = ssub.s32 %s16, 1
        // Predicated region
        $region13: #{tpu_custom_call.1} parent=11 // pred_check
          %p230 = pneg %p105
        $region14: #{tpu_custom_call.1} parent=11 // pred_check_branch
          %232 = sbr.rel (%p230) target = $region16
        $region15: #{tpu_custom_call.1} parent=11 // pred_region
          _
        $region16: #{tpu_custom_call.1} parent=11 // pred_fallthru
          _
        // Predicated region
        $region17: #{tpu_custom_call.1} parent=11 // pred_check
          %p233 = pneg %p126
        $region18: #{tpu_custom_call.1} parent=11 // pred_check_branch
          %235 = sbr.rel (%p233) target = $region20
        $region19: #{tpu_custom_call.1} parent=11 // pred_region
          _
        $region20: #{tpu_custom_call.1} parent=11 // pred_fallthru
          _
        // Predicated region
        $region21: #{tpu_custom_call.1} parent=11 // pred_check
          %p236 = pneg %p147
        $region22: #{tpu_custom_call.1} parent=11 // pred_check_branch
          %238 = sbr.rel (%p236) target = $region24
        $region23: #{tpu_custom_call.1} parent=11 // pred_region
          _
        $region24: #{tpu_custom_call.1} parent=11 // pred_fallthru
          _
        // Predicated region
        $region25: #{tpu_custom_call.1} parent=11 // pred_check
          %p239 = pneg %p168
        $region26: #{tpu_custom_call.1} parent=11 // pred_check_branch
          %241 = sbr.rel (%p239) target = $region28
        $region27: #{tpu_custom_call.1} parent=11 // pred_region
          _
        $region28: #{tpu_custom_call.1} parent=11 // pred_fallthru
          _
        // Predicated region
        $region29: #{tpu_custom_call.1} parent=11 // pred_check
          %p242 = pneg %p189
        $region30: #{tpu_custom_call.1} parent=11 // pred_check_branch
          %244 = sbr.rel (%p242) target = $region32
        $region31: #{tpu_custom_call.1} parent=11 // pred_region
          _
        $region32: #{tpu_custom_call.1} parent=11 // pred_fallthru
          _
      $region12: #{tpu_custom_call.1} parent=5 // pred_fallthru
        _
      %p245 = scmp.lt.s32.totalorder %s16, 2
      // Predicated region
      $region33: #{tpu_custom_call.1} parent=5 // pred_check
        %p246 = pneg %p245
      $region34: #{tpu_custom_call.1} parent=5 // pred_check_branch
        %248 = sbr.rel (%p246) target = $region36
      $region35: #{tpu_custom_call.1} parent=5 // pred_region
        // Predicated region
        $region37: #{tpu_custom_call.1} parent=35 // pred_check
          %p249 = pneg %p50
        $region38: #{tpu_custom_call.1} parent=35 // pred_check_branch
          %251 = sbr.rel (%p249) target = $region40
        $region39: #{tpu_custom_call.1} parent=35 // pred_region
          %s252 = smul.u32 2, %s24
          %p253 = scmp.lt.s32.totalorder %s23, 1
          %s254 = scalar_select %p253, %s23, 1
          %p255 = scmp.lt.s32.totalorder %s252, 1
          %s256 = scalar_select %p255, %s252, 1
          %s257 = smul.addr %s254, 2
          %s258 = sadd.s32 %s256, %s257
          %s259 = smul.addr %s258, 8
          %s260 = scalar_lea.vmem %s0, %s259
          %s261 = smul.u32 2, %s24
        $region40: #{tpu_custom_call.1} parent=35 // pred_fallthru
          _
        // Predicated region
        $region41: #{tpu_custom_call.1} parent=35 // pred_check
          %p262 = pneg %p78
        $region42: #{tpu_custom_call.1} parent=35 // pred_check_branch
          %264 = sbr.rel (%p262) target = $region44
        $region43: #{tpu_custom_call.1} parent=35 // pred_region
          %s265 = smul.u32 2, %s24
          %p266 = scmp.lt.s32.totalorder %s23, 1
          %s267 = scalar_select %p266, %s23, 1
          %p268 = scmp.lt.s32.totalorder %s265, 1
          %s269 = scalar_select %p268, %s265, 1
          %s270 = smul.addr %s267, 2
          %s271 = sadd.s32 %s269, %s270
          %s272 = smul.addr %s271, 8
          %s273 = scalar_lea.vmem %s1, %s272
          %s274 = smul.u32 2, %s24
        $region44: #{tpu_custom_call.1} parent=35 // pred_fallthru
          _
      $region36: #{tpu_custom_call.1} parent=5 // pred_fallthru
        _
      %p275 = scmp.le.s32.totalorder 1, %s16
      %p276 = scmp.lt.s32.totalorder %s16, 3
      %p277 = pnand %p275, %p276
      %p278 = pneg %p277
      // Predicated region
      $region45: #{tpu_custom_call.1} parent=5 // pred_check
        _
      $region46: #{tpu_custom_call.1} parent=5 // pred_check_branch
        %280 = sbr.rel (%p277) target = $region48
      $region47: #{tpu_custom_call.1} parent=5 // pred_region
        %s281 = ssub.s32 %s16, 1
        %s282 = smul.u32 2, %s26
        %p283 = scmp.lt.s32.totalorder %s25, 1
        %s284 = scalar_select %p283, %s25, 1
        %p285 = scmp.lt.s32.totalorder %s282, 1
        %s286 = scalar_select %p285, %s282, 1
        %s287 = smul.addr %s284, 2
        %s288 = sadd.s32 %s286, %s287
        %s289 = smul.addr %s288, 8
        %s290 = scalar_lea.vmem %s0, %s289
        %p291 = pneg %p56
        %p292 = pneg %p53
        %s293 = smul.u32 2, %s26
        %p294 = scmp.lt.s32.totalorder %s25, 1
        %s295 = scalar_select %p294, %s25, 1
        %p296 = scmp.lt.s32.totalorder %s293, 1
        %s297 = scalar_select %p296, %s293, 1
        %s298 = smul.addr %s295, 2
        %s299 = sadd.s32 %s297, %s298
        %s300 = smul.addr %s299, 8
        %s301 = scalar_lea.vmem %s1, %s300
        %p302 = pneg %p84
        %p303 = pneg %p81
        %p304 = pneg %p105
        %p305 = pneg %p102
        %p306 = pneg %p126
        %p307 = pneg %p123
        %p308 = pneg %p147
        %p309 = pneg %p144
        %p310 = pneg %p168
        %p311 = pneg %p165
        %p312 = pneg %p189
        %p313 = pneg %p186
        %p314 = pneg %p215
        %p315 = pneg %p212
        %s316 = sand.u32 %s202, 1
        %s317 = scalar_lea.sflag [#allocation4], %s316
        %s318 = sand.u32 %s202, 1
        %s319 = smul.addr %s318, 64
        %s320 = scalar_lea.vmem [#allocation3], %s319
        %s321 = smul.u32 2, %s26
        %p322 = scmp.lt.s32.totalorder %s25, 1
        %s323 = scalar_select %p322, %s25, 1
        %p324 = scmp.lt.s32.totalorder %s321, 1
        %s325 = scalar_select %p324, %s321, 1
        %s326 = smul.addr %s323, 2
        %s327 = sadd.s32 %s325, %s326
        %s328 = smul.addr %s327, 8
        %s329 = scalar_lea.vmem %s0, %s328
        %s330 = smul.u32 2, %s26
        %s331 = smul.u32 2, %s26
        %p332 = scmp.lt.s32.totalorder %s25, 1
        %s333 = scalar_select %p332, %s25, 1
        %p334 = scmp.lt.s32.totalorder %s331, 1
        %s335 = scalar_select %p334, %s331, 1
        %s336 = smul.addr %s333, 2
        %s337 = sadd.s32 %s335, %s336
        %s338 = smul.addr %s337, 8
        %s339 = scalar_lea.vmem %s1, %s338
        %s340 = smul.u32 2, %s26
        %p341 = scmp.eq.s32.totalorder %s26, 0
        // Predicated region
        $region49: #{tpu_custom_call.1} parent=47 // pred_check
          %p342 = pneg %p341
        $region50: #{tpu_custom_call.1} parent=47 // pred_check_branch
          %344 = sbr.rel (%p342) target = $region52
        $region51: #{tpu_custom_call.1} parent=47 // pred_region
          %vm345 = vcmask 7168
          %346 = vst.msk [vmem:[#allocation2] sm:$0xff] %vm345, 0.0
          %347 = vst.msk [vmem:[#allocation2 + $0x8] sm:$0xff] %vm345, 0.0
          %348 = vst.msk [vmem:[#allocation2 + $0x10] sm:$0xff] %vm345, 0.0
          %349 = vst.msk [vmem:[#allocation2 + $0x18] sm:$0xff] %vm345, 0.0
        $region52: #{tpu_custom_call.1} parent=47 // pred_fallthru
          _
        %v350 = vld [vmem:[%s2] sm:$0xff]
        %v351 = vld [vmem:[%s2 + $0x8] sm:$0xff]
        %v352 = vld [vmem:[%s2 + $0x10] sm:$0xff]
        %v353 = vld [vmem:[%s2 + $0x18] sm:$0xff]
        %v354 = vld [vmem:[%s329] sm:$0xff]
        %v355 = vld [vmem:[%s329 + $0x8] sm:$0xff]
        %v356 = vld [vmem:[%s3] sm:$0xff]
        %v357 = vld [vmem:[%s3 + $0x8] sm:$0xff]
        %v358 = vld [vmem:[%s3 + $0x10] sm:$0xff]
        %v359 = vld [vmem:[%s3 + $0x18] sm:$0xff]
        %v360 = vld [vmem:[%s339] sm:$0xff]
        %v361 = vld [vmem:[%s339 + $0x8] sm:$0xff]
        %vm362 = vcmask 64512
        %v364 = vsel %vm362, %v356, 0
        %v367 = vsel %vm362, %v357, 0
        %v370 = vsel %vm362, %v358, 0
        %v373 = vsel %vm362, %v359, 0
        %375 = vmatprep.subr.mxu0 %v361
        %376 = vmatpush1.msra.mxu0 %v360
        %377 = vmatprep.subr.mxu0 0.0
        %378 = vmatpush1.msra.mxu0 0.0
        %379 = vmatprep.subr.mxu0 0.0
        %380 = vmatpush1.msra.mxu0 0.0
        %381 = vmatprep.subr.mxu0 0.0
        %382 = vmatpush1.msra.mxu0 0.0
        %383 = vmatprep.subr.mxu0 0.0
        %384 = vmatpush1.msra.mxu0 0.0
        %385 = vmatprep.subr.mxu0 0.0
        %386 = vmatpush1.msra.mxu0 0.0
        %387 = vmatprep.subr.mxu0 0.0
        %388 = vmatpush1.msra.mxu0 0.0
        %389 = vmatprep.subr.mxu0 0.0
        %390 = vmatpush1.msra.mxu0 0.0
        %391 = vmatprep.subr.mxu0 0.0
        %392 = vmatpush1.msra.mxu0 0.0
        %393 = vmatprep.subr.mxu0 0.0
        %394 = vmatpush1.msra.mxu0 0.0
        %395 = vmatprep.subr.mxu0 0.0
        %396 = vmatpush1.msra.mxu0 0.0
        %397 = vmatprep.subr.mxu0 0.0
        %398 = vmatpush1.msra.mxu0 0.0
        %399 = vmatprep.subr.mxu0 0.0
        %400 = vmatpush1.msra.mxu0 0.0
        %401 = vmatprep.subr.mxu0 0.0
        %402 = vmatpush1.msra.mxu0 0.0
        %403 = vmatprep.subr.mxu0 0.0
        %404 = vmatpush1.msra.mxu0 0.0
        %405 = vmatprep.subr.mxu0 0.0
        %406 = vmatpush1.msra.mxu0 0.0
        %407 = vmatprep.subr.mxu0 0.0
        %408 = vmatpush1.msra.mxu0 0.0
        %409 = vmatprep.subr.mxu0 0.0
        %410 = vmatpush1.msra.mxu0 0.0
        %411 = vmatprep.subr.mxu0 0.0
        %412 = vmatpush1.msra.mxu0 0.0
        %413 = vmatprep.subr.mxu0 0.0
        %414 = vmatpush1.msra.mxu0 0.0
        %415 = vmatprep.subr.mxu0 0.0
        %416 = vmatpush1.msra.mxu0 0.0
        %417 = vmatprep.subr.mxu0 0.0
        %418 = vmatpush1.msra.mxu0 0.0
        %419 = vmatprep.subr.mxu0 0.0
        %420 = vmatpush1.msra.mxu0 0.0
        %421 = vmatprep.subr.mxu0 0.0
        %422 = vmatpush1.msra.mxu0 0.0
        %423 = vmatprep.subr.mxu0 0.0
        %424 = vmatpush1.msra.mxu0 0.0
        %425 = vmatprep.subr.mxu0 0.0
        %426 = vmatpush1.msra.mxu0 0.0
        %427 = vmatprep.subr.mxu0 0.0
        %428 = vmatpush1.msra.mxu0 0.0
        %429 = vmatprep.subr.mxu0 0.0
        %430 = vmatpush1.msra.mxu0 0.0
        %431 = vmatprep.subr.mxu0 0.0
        %432 = vmatpush1.msra.mxu0 0.0
        %433 = vmatprep.subr.mxu0 0.0
        %434 = vmatpush1.msra.mxu0 0.0
        %435 = vmatprep.subr.mxu0 0.0
        %436 = vmatpush1.msra.mxu0 0.0
        %437 = vmatprep.subr.mxu0 0.0
        %438 = vmatpush1.msra.mxu0 0.0
        %439 = vmatprep.mubr.f32.mxu0 0.0
        %440 = vmatmul.mubr.f32.gmra.mrb[0].mxu0 %v364
        %v441 = vpop.f32.mrb[0].mxu0
        %v442 = vadd.f32 0.0, %v441
        %v443 = vpop.f32.mrb[0].mxu0
        %v444 = vadd.f32 0.0, %v443
        %445 = vmatprep.mubr.f32.mxu0 0.0
        %446 = vmatmul.mubr.f32.gmra.mrb[0].mxu0 %v367
        %v447 = vpop.f32.mrb[0].mxu0
        %v448 = vadd.f32 0.0, %v447
        %v449 = vpop.f32.mrb[0].mxu0
        %v450 = vadd.f32 0.0, %v449
        %451 = vmatprep.mubr.f32.mxu0 0.0
        %452 = vmatmul.mubr.f32.gmra.mrb[0].mxu0 %v370
        %v453 = vpop.f32.mrb[0].mxu0
        %v454 = vadd.f32 0.0, %v453
        %v455 = vpop.f32.mrb[0].mxu0
        %v456 = vadd.f32 0.0, %v455
        %457 = vmatprep.mubr.f32.mxu0 0.0
        %458 = vmatmul.mubr.f32.gmra.mrb[0].mxu0 %v373
        %v459 = vpop.f32.mrb[0].mxu0
        %v460 = vadd.f32 0.0, %v459
        %v461 = vpop.f32.mrb[0].mxu0
        %v462 = vadd.f32 0.0, %v461
        %463 = vdwg.mxu0
        %v465 = vsel %vm362, %v350, 0
        %v468 = vsel %vm362, %v351, 0
        %v471 = vsel %vm362, %v352, 0
        %v474 = vsel %vm362, %v353, 0
        %476 = vmatprep.subr.mxu0 %v355
        %477 = vmatpush1.msra.mxu0 %v354
        %478 = vmatprep.subr.mxu0 0.0
        %479 = vmatpush1.msra.mxu0 0.0
        %480 = vmatprep.subr.mxu0 0.0
        %481 = vmatpush1.msra.mxu0 0.0
        %482 = vmatprep.subr.mxu0 0.0
        %483 = vmatpush1.msra.mxu0 0.0
        %484 = vmatprep.subr.mxu0 0.0
        %485 = vmatpush1.msra.mxu0 0.0
        %486 = vmatprep.subr.mxu0 0.0
        %487 = vmatpush1.msra.mxu0 0.0
        %488 = vmatprep.subr.mxu0 0.0
        %489 = vmatpush1.msra.mxu0 0.0
        %490 = vmatprep.subr.mxu0 0.0
        %491 = vmatpush1.msra.mxu0 0.0
        %492 = vmatprep.subr.mxu0 0.0
        %493 = vmatpush1.msra.mxu0 0.0
        %494 = vmatprep.subr.mxu0 0.0
        %495 = vmatpush1.msra.mxu0 0.0
        %496 = vmatprep.subr.mxu0 0.0
        %497 = vmatpush1.msra.mxu0 0.0
        %498 = vmatprep.subr.mxu0 0.0
        %499 = vmatpush1.msra.mxu0 0.0
        %500 = vmatprep.subr.mxu0 0.0
        %501 = vmatpush1.msra.mxu0 0.0
        %502 = vmatprep.subr.mxu0 0.0
        %503 = vmatpush1.msra.mxu0 0.0
        %504 = vmatprep.subr.mxu0 0.0
        %505 = vmatpush1.msra.mxu0 0.0
        %506 = vmatprep.subr.mxu0 0.0
        %507 = vmatpush1.msra.mxu0 0.0
        %508 = vmatprep.subr.mxu0 0.0
        %509 = vmatpush1.msra.mxu0 0.0
        %510 = vmatprep.subr.mxu0 0.0
        %511 = vmatpush1.msra.mxu0 0.0
        %512 = vmatprep.subr.mxu0 0.0
        %513 = vmatpush1.msra.mxu0 0.0
        %514 = vmatprep.subr.mxu0 0.0
        %515 = vmatpush1.msra.mxu0 0.0
        %516 = vmatprep.subr.mxu0 0.0
        %517 = vmatpush1.msra.mxu0 0.0
        %518 = vmatprep.subr.mxu0 0.0
        %519 = vmatpush1.msra.mxu0 0.0
        %520 = vmatprep.subr.mxu0 0.0
        %521 = vmatpush1.msra.mxu0 0.0
        %522 = vmatprep.subr.mxu0 0.0
        %523 = vmatpush1.msra.mxu0 0.0
        %524 = vmatprep.subr.mxu0 0.0
        %525 = vmatpush1.msra.mxu0 0.0
        %526 = vmatprep.subr.mxu0 0.0
        %527 = vmatpush1.msra.mxu0 0.0
        %528 = vmatprep.subr.mxu0 0.0
        %529 = vmatpush1.msra.mxu0 0.0
        %530 = vmatprep.subr.mxu0 0.0
        %531 = vmatpush1.msra.mxu0 0.0
        %532 = vmatprep.subr.mxu0 0.0
        %533 = vmatpush1.msra.mxu0 0.0
        %534 = vmatprep.subr.mxu0 0.0
        %535 = vmatpush1.msra.mxu0 0.0
        %536 = vmatprep.subr.mxu0 0.0
        %537 = vmatpush1.msra.mxu0 0.0
        %538 = vmatprep.subr.mxu0 0.0
        %539 = vmatpush1.msra.mxu0 0.0
        %540 = vmatprep.mubr.f32.mxu0 0.0
        %541 = vmatmul.mubr.f32.gmra.mrb[0].mxu0 %v465
        %v542 = vpop.f32.mrb[0].mxu0
        %v543 = vadd.f32 %v442, %v542
        %v544 = vpop.f32.mrb[0].mxu0
        %v545 = vadd.f32 %v444, %v544
        %546 = vmatprep.mubr.f32.mxu0 0.0
        %547 = vmatmul.mubr.f32.gmra.mrb[0].mxu0 %v468
        %v548 = vpop.f32.mrb[0].mxu0
        %v549 = vadd.f32 %v448, %v548
        %v550 = vpop.f32.mrb[0].mxu0
        %v551 = vadd.f32 %v450, %v550
        %552 = vmatprep.mubr.f32.mxu0 0.0
        %553 = vmatmul.mubr.f32.gmra.mrb[0].mxu0 %v471
        %v554 = vpop.f32.mrb[0].mxu0
        %v555 = vadd.f32 %v454, %v554
        %v556 = vpop.f32.mrb[0].mxu0
        %v557 = vadd.f32 %v456, %v556
        %558 = vmatprep.mubr.f32.mxu0 0.0
        %559 = vmatmul.mubr.f32.gmra.mrb[0].mxu0 %v474
        %v560 = vpop.f32.mrb[0].mxu0
        %v561 = vadd.f32 %v460, %v560
        %v562 = vpop.f32.mrb[0].mxu0
        %v563 = vadd.f32 %v462, %v562
        %564 = vdwg.mxu0
        %v565 = vld [vmem:[%s4] sm:$0xff]
        %v566 = vld [vmem:[%s4 + $0x8] sm:$0xff]
        %v567 = vld [vmem:[%s4 + $0x10] sm:$0xff]
        %v568 = vld [vmem:[%s4 + $0x18] sm:$0xff]
        %570 = vset.pattern.permute.xlu0 0
        %571 = vperm.xlu0 %570, %v565
        %v572 = vpop.permute.xlu0 %571
        %575 = vset.pattern.permute.xlu0 0
        %576 = vperm.xlu0 %575, %v566
        %v577 = vpop.permute.xlu0 %576
        %580 = vset.pattern.permute.xlu0 0
        %581 = vperm.xlu0 %580, %v567
        %v582 = vpop.permute.xlu0 %581
        %585 = vset.pattern.permute.xlu0 0
        %586 = vperm.xlu0 %585, %v568
        %v587 = vpop.permute.xlu0 %586
        %v589 = vadd.f32 %v543, %v572
        %v590 = vadd.f32 %v545, %v572
        %v591 = vadd.f32 %v549, %v577
        %v592 = vadd.f32 %v551, %v577
        %v593 = vadd.f32 %v555, %v582
        %v594 = vadd.f32 %v557, %v582
        %v595 = vadd.f32 %v561, %v587
        %v596 = vadd.f32 %v563, %v587
        %v597 = vmax.f32 %v589, 0.0
        %v598 = vmax.f32 %v590, 0.0
        %v599 = vmax.f32 %v591, 0.0
        %v600 = vmax.f32 %v592, 0.0
        %v601 = vmax.f32 %v593, 0.0
        %v602 = vmax.f32 %v594, 0.0
        %v603 = vmax.f32 %v595, 0.0
        %v604 = vmax.f32 %v596, 0.0
        %s605 = smul.u32 %s26, 256
        %s606 = sshra.s32 %s605, 7
        %s607 = sand.u32 %s605, 127
        %s608 = smul.addr %s606, 8
        %s609 = scalar_lea.vmem %s320, %s608 [#allocation3]
        %610 = vst [vmem:[%s609] sm:$0xff] %v597
        %611 = vst [vmem:[%s609 + $0x8] sm:$0xff] %v598
        %612 = vst [vmem:[%s609 + $0x10] sm:$0xff] %v599
        %613 = vst [vmem:[%s609 + $0x18] sm:$0xff] %v600
        %614 = vst [vmem:[%s609 + $0x20] sm:$0xff] %v601
        %615 = vst [vmem:[%s609 + $0x28] sm:$0xff] %v602
        %616 = vst [vmem:[%s609 + $0x30] sm:$0xff] %v603
        %617 = vst [vmem:[%s609 + $0x38] sm:$0xff] %v604
        %v618 = vld [vmem:[#allocation2] sm:$0xff]
        %v619 = vld [vmem:[#allocation2 + $0x8] sm:$0xff]
        %v620 = vld [vmem:[#allocation2 + $0x10] sm:$0xff]
        %v621 = vld [vmem:[#allocation2 + $0x18] sm:$0xff]
        %v622 = vadd.f32 %v597, %v598
        %623 = vadd.xlane.f32.xlu0 %v622
        %v624 = vpop.xlane.xlu0 %623
        %v625 = vadd.f32 %v599, %v600
        %626 = vadd.xlane.f32.xlu0 %v625
        %v627 = vpop.xlane.xlu0 %626
        %v628 = vadd.f32 %v601, %v602
        %629 = vadd.xlane.f32.xlu0 %v628
        %v630 = vpop.xlane.xlu0 %629
        %v631 = vadd.f32 %v603, %v604
        %632 = vadd.xlane.f32.xlu0 %v631
        %v633 = vpop.xlane.xlu0 %632
        %v634 = vadd.f32 %v618, %v624
        %v635 = vadd.f32 %v619, %v627
        %v636 = vadd.f32 %v620, %v630
        %v637 = vadd.f32 %v621, %v633
        %vm638 = vcmask 7168
        %639 = vst.msk [vmem:[#allocation2] sm:$0xff] %vm638, %v634
        %640 = vst.msk [vmem:[#allocation2 + $0x8] sm:$0xff] %vm638, %v635
        %641 = vst.msk [vmem:[#allocation2 + $0x10] sm:$0xff] %vm638, %v636
        %642 = vst.msk [vmem:[#allocation2 + $0x18] sm:$0xff] %vm638, %v637
        // Predicated region
        $region53: #{tpu_custom_call.1} parent=47 // pred_check
          %p643 = pneg %p341
        $region54: #{tpu_custom_call.1} parent=47 // pred_check_branch
          %645 = sbr.rel (%p643) target = $region56
        $region55: #{tpu_custom_call.1} parent=47 // pred_region
          %v646 = vld [vmem:[#allocation2] sm:$0xff]
          %v647 = vld [vmem:[#allocation2 + $0x8] sm:$0xff]
          %v648 = vld [vmem:[#allocation2 + $0x10] sm:$0xff]
          %v649 = vld [vmem:[#allocation2 + $0x18] sm:$0xff]
          %v650 = vld [vmem:[%s4] sm:$0xff]
          %v651 = vld [vmem:[%s4 + $0x8] sm:$0xff]
          %v652 = vld [vmem:[%s4 + $0x10] sm:$0xff]
          %v653 = vld [vmem:[%s4 + $0x18] sm:$0xff]
          %658 = vrot.lane.b32.xlu0 %v650, 127
          %v659 = vpop.permute.xlu0 %658
          %660 = vrot.lane.b32.xlu0 %v651, 127
          %v661 = vpop.permute.xlu0 %660
          %662 = vrot.lane.b32.xlu0 %v652, 127
          %v663 = vpop.permute.xlu0 %662
          %664 = vrot.lane.b32.xlu0 %v653, 127
          %v665 = vpop.permute.xlu0 %664
          %v670 = vsub.f32 %v646, %v659
          %v671 = vsub.f32 %v647, %v661
          %v672 = vsub.f32 %v648, %v663
          %v673 = vsub.f32 %v649, %v665
          %v674 = vld [vmem:[%s5] sm:$0xff]
          %vm675 = vcmask 261120
          %v677 = vsel %vm675, %v674, 0
          %679 = vmatprep.subr.mxu0 0.0
          %680 = vmatpush1.msra.mxu0 %v670
          %681 = vmatprep.subr.mxu0 0.0
          %682 = vmatpush1.msra.mxu0 %v671
          %683 = vmatprep.subr.mxu0 0.0
          %684 = vmatpush1.msra.mxu0 %v672
          %685 = vmatprep.subr.mxu0 0.0
          %686 = vmatpush1.msra.mxu0 %v673
          %687 = vmatprep.subr.mxu0 0.0
          %688 = vmatpush1.msra.mxu0 0.0
          %689 = vmatprep.subr.mxu0 0.0
          %690 = vmatpush1.msra.mxu0 0.0
          %691 = vmatprep.subr.mxu0 0.0
          %692 = vmatpush1.msra.mxu0 0.0
          %693 = vmatprep.subr.mxu0 0.0
          %694 = vmatpush1.msra.mxu0 0.0
          %695 = vmatprep.subr.mxu0 0.0
          %696 = vmatpush1.msra.mxu0 0.0
          %697 = vmatprep.subr.mxu0 0.0
          %698 = vmatpush1.msra.mxu0 0.0
          %699 = vmatprep.subr.mxu0 0.0
          %700 = vmatpush1.msra.mxu0 0.0
          %701 = vmatprep.subr.mxu0 0.0
          %702 = vmatpush1.msra.mxu0 0.0
          %703 = vmatprep.subr.mxu0 0.0
          %704 = vmatpush1.msra.mxu0 0.0
          %705 = vmatprep.subr.mxu0 0.0
          %706 = vmatpush1.msra.mxu0 0.0
          %707 = vmatprep.subr.mxu0 0.0
          %708 = vmatpush1.msra.mxu0 0.0
          %709 = vmatprep.subr.mxu0 0.0
          %710 = vmatpush1.msra.mxu0 0.0
          %711 = vmatprep.subr.mxu0 0.0
          %712 = vmatpush1.msra.mxu0 0.0
          %713 = vmatprep.subr.mxu0 0.0
          %714 = vmatpush1.msra.mxu0 0.0
          %715 = vmatprep.subr.mxu0 0.0
          %716 = vmatpush1.msra.mxu0 0.0
          %717 = vmatprep.subr.mxu0 0.0
          %718 = vmatpush1.msra.mxu0 0.0
          %719 = vmatprep.subr.mxu0 0.0
          %720 = vmatpush1.msra.mxu0 0.0
          %721 = vmatprep.subr.mxu0 0.0
          %722 = vmatpush1.msra.mxu0 0.0
          %723 = vmatprep.subr.mxu0 0.0
          %724 = vmatpush1.msra.mxu0 0.0
          %725 = vmatprep.subr.mxu0 0.0
          %726 = vmatpush1.msra.mxu0 0.0
          %727 = vmatprep.subr.mxu0 0.0
          %728 = vmatpush1.msra.mxu0 0.0
          %729 = vmatprep.subr.mxu0 0.0
          %730 = vmatpush1.msra.mxu0 0.0
          %731 = vmatprep.subr.mxu0 0.0
          %732 = vmatpush1.msra.mxu0 0.0
          %733 = vmatprep.subr.mxu0 0.0
          %734 = vmatpush1.msra.mxu0 0.0
          %735 = vmatprep.subr.mxu0 0.0
          %736 = vmatpush1.msra.mxu0 0.0
          %737 = vmatprep.subr.mxu0 0.0
          %738 = vmatpush1.msra.mxu0 0.0
          %739 = vmatprep.subr.mxu0 0.0
          %740 = vmatpush1.msra.mxu0 0.0
          %741 = vmatprep.subr.mxu0 0.0
          %742 = vmatpush1.msra.mxu0 0.0
          %743 = vmatprep.mubr.f32.mxu0 0.0
          %744 = vmatmul.mubr.f32.gmra.mrb[0].mxu0 %v677
          %v745 = vpop.f32.mrb[0].mxu0
          %v746 = vadd.f32 0.0, %v745
          %v747 = vpop.f32.mrb[0].mxu0
          %748 = vdwg.mxu0
          %v749 = vmax.f32 %v746, 0.0
          %v750 = vld [vmem:[%s6] sm:$0xff]
          %v751 = vld [vmem:[%s6 + $0x8] sm:$0xff]
          %v752 = vld [vmem:[%s6 + $0x10] sm:$0xff]
          %v753 = vld [vmem:[%s6 + $0x18] sm:$0xff]
          %v755 = vsel %vm362, %v750, 0
          %v758 = vsel %vm362, %v751, 0
          %v761 = vsel %vm362, %v752, 0
          %v764 = vsel %vm362, %v753, 0
          %766 = vmatprep.subr.mxu0 0.0
          %767 = vmatpush1.msra.mxu0 %v749
          %768 = vmatprep.subr.mxu0 0.0
          %769 = vmatpush1.msra.mxu0 0.0
          %770 = vmatprep.subr.mxu0 0.0
          %771 = vmatpush1.msra.mxu0 0.0
          %772 = vmatprep.subr.mxu0 0.0
          %773 = vmatpush1.msra.mxu0 0.0
          %774 = vmatprep.subr.mxu0 0.0
          %775 = vmatpush1.msra.mxu0 0.0
          %776 = vmatprep.subr.mxu0 0.0
          %777 = vmatpush1.msra.mxu0 0.0
          %778 = vmatprep.subr.mxu0 0.0
          %779 = vmatpush1.msra.mxu0 0.0
          %780 = vmatprep.subr.mxu0 0.0
          %781 = vmatpush1.msra.mxu0 0.0
          %782 = vmatprep.subr.mxu0 0.0
          %783 = vmatpush1.msra.mxu0 0.0
          %784 = vmatprep.subr.mxu0 0.0
          %785 = vmatpush1.msra.mxu0 0.0
          %786 = vmatprep.subr.mxu0 0.0
          %787 = vmatpush1.msra.mxu0 0.0
          %788 = vmatprep.subr.mxu0 0.0
          %789 = vmatpush1.msra.mxu0 0.0
          %790 = vmatprep.subr.mxu0 0.0
          %791 = vmatpush1.msra.mxu0 0.0
          %792 = vmatprep.subr.mxu0 0.0
          %793 = vmatpush1.msra.mxu0 0.0
          %794 = vmatprep.subr.mxu0 0.0
          %795 = vmatpush1.msra.mxu0 0.0
          %796 = vmatprep.subr.mxu0 0.0
          %797 = vmatpush1.msra.mxu0 0.0
          %798 = vmatprep.subr.mxu0 0.0
          %799 = vmatpush1.msra.mxu0 0.0
          %800 = vmatprep.subr.mxu0 0.0
          %801 = vmatpush1.msra.mxu0 0.0
          %802 = vmatprep.subr.mxu0 0.0
          %803 = vmatpush1.msra.mxu0 0.0
          %804 = vmatprep.subr.mxu0 0.0
          %805 = vmatpush1.msra.mxu0 0.0
          %806 = vmatprep.subr.mxu0 0.0
          %807 = vmatpush1.msra.mxu0 0.0
          %808 = vmatprep.subr.mxu0 0.0
          %809 = vmatpush1.msra.mxu0 0.0
          %810 = vmatprep.subr.mxu0 0.0
          %811 = vmatpush1.msra.mxu0 0.0
          %812 = vmatprep.subr.mxu0 0.0
          %813 = vmatpush1.msra.mxu0 0.0
          %814 = vmatprep.subr.mxu0 0.0
          %815 = vmatpush1.msra.mxu0 0.0
          %816 = vmatprep.subr.mxu0 0.0
          %817 = vmatpush1.msra.mxu0 0.0
          %818 = vmatprep.subr.mxu0 0.0
          %819 = vmatpush1.msra.mxu0 0.0
          %820 = vmatprep.subr.mxu0 0.0
          %821 = vmatpush1.msra.mxu0 0.0
          %822 = vmatprep.subr.mxu0 0.0
          %823 = vmatpush1.msra.mxu0 0.0
          %824 = vmatprep.subr.mxu0 0.0
          %825 = vmatpush1.msra.mxu0 0.0
          %826 = vmatprep.subr.mxu0 0.0
          %827 = vmatpush1.msra.mxu0 0.0
          %828 = vmatprep.subr.mxu0 0.0
          %829 = vmatpush1.msra.mxu0 0.0
          %830 = vmatprep.mubr.f32.mxu0 0.0
          %831 = vmatmul.mubr.f32.gmra.mrb[0].mxu0 %v755
          %v832 = vpop.f32.mrb[0].mxu0
          %v833 = vadd.f32 0.0, %v832
          %v834 = vpop.f32.mrb[0].mxu0
          %835 = vmatprep.mubr.f32.mxu0 0.0
          %836 = vmatmul.mubr.f32.gmra.mrb[0].mxu0 %v758
          %v837 = vpop.f32.mrb[0].mxu0
          %v838 = vadd.f32 0.0, %v837
          %v839 = vpop.f32.mrb[0].mxu0
          %840 = vmatprep.mubr.f32.mxu0 0.0
          %841 = vmatmul.mubr.f32.gmra.mrb[0].mxu0 %v761
          %v842 = vpop.f32.mrb[0].mxu0
          %v843 = vadd.f32 0.0, %v842
          %v844 = vpop.f32.mrb[0].mxu0
          %845 = vmatprep.mubr.f32.mxu0 0.0
          %846 = vmatmul.mubr.f32.gmra.mrb[0].mxu0 %v764
          %v847 = vpop.f32.mrb[0].mxu0
          %v848 = vadd.f32 0.0, %v847
          %v849 = vpop.f32.mrb[0].mxu0
          %850 = vdwg.mxu0
          %v851 = vxor.u32 %v833, 2147483648
          %v852 = vxor.u32 %v838, 2147483648
          %v853 = vxor.u32 %v843, 2147483648
          %v854 = vxor.u32 %v848, 2147483648
          %v855 = vmul.f32 %v851, 1.442695
          %v856 = vpow.pop %v855
          %v857 = vmul.f32 %v852, 1.442695
          %v858 = vpow.pop %v857
          %v859 = vmul.f32 %v853, 1.442695
          %v860 = vpow.pop %v859
          %v861 = vmul.f32 %v854, 1.442695
          %v862 = vpow.pop %v861
          %v863 = vadd.f32 %v856, 1.0
          %v864 = vadd.f32 %v858, 1.0
          %v865 = vadd.f32 %v860, 1.0
          %v866 = vadd.f32 %v862, 1.0
          %v867 = vrcp.pop %v863
          %v868 = vmul.f32 1.0, %v867
          %v869 = vrcp.pop %v864
          %v870 = vmul.f32 1.0, %v869
          %v871 = vrcp.pop %v865
          %v872 = vmul.f32 1.0, %v871
          %v873 = vrcp.pop %v866
          %v874 = vmul.f32 1.0, %v873
          %v875 = vadd.f32 %v868, 1.0
          %v876 = vadd.f32 %v870, 1.0
          %v877 = vadd.f32 %v872, 1.0
          %v878 = vadd.f32 %v874, 1.0
          %v879 = vld [vmem:[%s320] sm:$0xff]
          %v880 = vld [vmem:[%s320 + $0x8] sm:$0xff]
          %v881 = vld [vmem:[%s320 + $0x10] sm:$0xff]
          %v882 = vld [vmem:[%s320 + $0x18] sm:$0xff]
          %v883 = vld [vmem:[%s320 + $0x20] sm:$0xff]
          %v884 = vld [vmem:[%s320 + $0x28] sm:$0xff]
          %v885 = vld [vmem:[%s320 + $0x30] sm:$0xff]
          %v886 = vld [vmem:[%s320 + $0x38] sm:$0xff]
          %888 = vset.pattern.permute.xlu0 0
          %889 = vperm.xlu0 %888, %v875
          %v890 = vpop.permute.xlu0 %889
          %893 = vset.pattern.permute.xlu0 0
          %894 = vperm.xlu0 %893, %v876
          %v895 = vpop.permute.xlu0 %894
          %898 = vset.pattern.permute.xlu0 0
          %899 = vperm.xlu0 %898, %v877
          %v900 = vpop.permute.xlu0 %899
          %903 = vset.pattern.permute.xlu0 0
          %904 = vperm.xlu0 %903, %v878
          %v905 = vpop.permute.xlu0 %904
          %v907 = vmul.f32 %v879, %v890
          %v908 = vmul.f32 %v880, %v890
          %v909 = vmul.f32 %v881, %v895
          %v910 = vmul.f32 %v882, %v895
          %v911 = vmul.f32 %v883, %v900
          %v912 = vmul.f32 %v884, %v900
          %v913 = vmul.f32 %v885, %v905
          %v914 = vmul.f32 %v886, %v905
          %915 = vst [vmem:[%s320] sm:$0xff] %v907
          %916 = vst [vmem:[%s320 + $0x8] sm:$0xff] %v908
          %917 = vst [vmem:[%s320 + $0x10] sm:$0xff] %v909
          %918 = vst [vmem:[%s320 + $0x18] sm:$0xff] %v910
          %919 = vst [vmem:[%s320 + $0x20] sm:$0xff] %v911
          %920 = vst [vmem:[%s320 + $0x28] sm:$0xff] %v912
          %921 = vst [vmem:[%s320 + $0x30] sm:$0xff] %v913
          %922 = vst [vmem:[%s320 + $0x38] sm:$0xff] %v914
        $region56: #{tpu_custom_call.1} parent=47 // pred_fallthru
          _
        %s923 = sand.u32 %s202, 1
        %s924 = scalar_lea.sflag [#allocation4], %s923
        %s925 = sand.u32 %s202, 1
        %s926 = smul.addr %s925, 64
        %s927 = scalar_lea.vmem [#allocation3], %s926
        // Predicated region
        $region57: #{tpu_custom_call.1} parent=47 // pred_check
          %p928 = pneg %p212
        $region58: #{tpu_custom_call.1} parent=47 // pred_check_branch
          %930 = sbr.rel (%p928) target = $region60
        $region59: #{tpu_custom_call.1} parent=47 // pred_region
          %s932 = ssub.s32 1024, 1024
          %933 = vsyncadd %s924, %s932
          %s934 = smul.addr %s25, 8
          %s935 = smul.addr %s934, 128
          %s936 = scalar_lea.hbm %s7, %s935
          %s937 = sshll.u32 %s927, 4
          %s938 = int_to_ptr.vmem [resolvable:$true] %s937
          %943 = dma.vmem_to_hbm [thread:$0]  %s938, 1024, %s936, %s924, 256, 256, 16
        $region60: #{tpu_custom_call.1} parent=47 // pred_fallthru
          _
      $region48: #{tpu_custom_call.1} parent=5 // pred_fallthru
        _
      %p944 = scmp.le.s32.totalorder 2, %s16
      // Predicated region
      $region61: #{tpu_custom_call.1} parent=5 // pred_check
        %p945 = pneg %p944
      $region62: #{tpu_custom_call.1} parent=5 // pred_check_branch
        %947 = sbr.rel (%p945) target = $region64
      $region63: #{tpu_custom_call.1} parent=5 // pred_region
        %s948 = ssub.s32 %s16, 2
        // Predicated region
        $region65: #{tpu_custom_call.1} parent=63 // pred_check
          %p949 = pneg %p218
        $region66: #{tpu_custom_call.1} parent=63 // pred_check_branch
          %951 = sbr.rel (%p949) target = $region68
        $region67: #{tpu_custom_call.1} parent=63 // pred_region
          %s952 = sand.u32 %s203, 1
          %s953 = scalar_lea.sflag [#allocation4], %s952
          %s954 = sand.u32 %s203, 1
          %s955 = smul.addr %s954, 64
          %s956 = scalar_lea.vmem [#allocation3], %s955
          %957 = dma.done %s953, 1024
        $region68: #{tpu_custom_call.1} parent=63 // pred_fallthru
          _
      $region64: #{tpu_custom_call.1} parent=5 // pred_fallthru
        _
    $region6: #{tpu_custom_call.1} parent=1 // loop_footer
      %s20 = sadd.s32 1, %s16
    $region7: #{tpu_custom_call.1} parent=1 // loop_footer_branch
      %15 = sbr.rel target = $region3
    $region8: #{tpu_custom_call.1} parent=1 // loop_exit
      _
    %958 = vsyncpa [#allocation4], 1
    %s959 = scalar_lea.sflag [#allocation4], 1
    %960 = vsyncpa %s959, 1

</llo_original>
